<compile_context>
chip_gen: v7x
topology: tpu7x:2x2x1
jax: 0.10.0
libtpu: 0.0.40
codegen_flags: <defaults>
</compile_context>

<pallas_src>
import functools

import jax
import jax.numpy as jnp
from jax.experimental import pallas as pl
from jax.experimental.pallas import tpu as pltpu

_EPS = 1e-5
_MIB = 1024 * 1024


# ----------------------------------------------------------------------------- budgets

@functools.lru_cache(maxsize=None)
def _tpu_budget():
    """Generation-aware VMEM / tile budgets (trace-time, cached)."""
    try:
        vmem_phys = int(pltpu.get_tpu_info().vmem_capacity_bytes)
    except Exception:
        try:
            kind = jax.devices()[0].device_kind.lower()
            vmem_phys = 64 * _MIB if "7" in kind else 128 * _MIB
        except Exception:
            vmem_phys = 64 * _MIB
    if vmem_phys >= 100 * _MIB:
        # v5e / v6e: 128 MiB physical VMEM, single TensorCore per chip.
        return {"vmem_limit": 64 * _MIB, "block_bytes": 10 * _MIB, "num_cores": 1}
    # v7x-class: 64 MiB VMEM per TensorCore, 2 TensorCores per chip.
    return {"vmem_limit": 40 * _MIB, "block_bytes": 5 * _MIB, "num_cores": 2}


def _sublane_multiple(dtype):
    # Sub-32-bit dtypes pack along sublanes: f32 -> 8, bf16 -> 16, int8/fp8 -> 32.
    return max(8, 32 // jnp.dtype(dtype).itemsize)


def _pick_channel_tile(C, bytes_per_channel, budget, sublane, min_blocks=1):
    """Largest legal channel tile that fits `budget` and (if possible) leaves
    at least `min_blocks` blocks along the channel grid axis.

    Legal: divisor of C that is a multiple of 8 (BlockSpec sublane rule) or
    equal to C.  Sublane-packed tiles (multiple of `sublane`) are preferred.
    """
    def legal(d):
        return C % d == 0 and (d == C or d % 8 == 0)

    packed = [d for d in range(C, 0, -1) if legal(d) and (d == C or d % sublane == 0)]
    loose = [d for d in range(C, 0, -1) if legal(d)]
    for cands in (packed, loose):
        for d in cands:
            if C // d >= min_blocks and d * bytes_per_channel <= budget:
                return d
    # Nothing satisfies both constraints: smallest legal tile (may leave one
    # TensorCore idle for tiny C — unavoidable).
    return loose[-1]


# ----------------------------------------------------------------------------- kernels

def _bn_fused_kernel(x_ref, gamma_ref, beta_ref, o_ref):
    """Single-pass BN for one channel tile: x_ref is (N, c_tile, HW).

    Single sweep: accumulate sum and sum-of-squares, var = max(E[x^2]-E[x]^2, 0).
    """
    x = x_ref[...].astype(jnp.float32)
    inv_cnt = 1.0 / (x.shape[0] * x.shape[2])
    # Lane reduction (axis 2) first, then cheap vreg adds over N (axis 0).
    s = jnp.sum(jnp.sum(x, axis=2, keepdims=True), axis=0, keepdims=True)
    ss = jnp.sum(jnp.sum(x * x, axis=2, keepdims=True), axis=0, keepdims=True)
    mean = s * inv_cnt                                         # (1, c_tile, 1)
    var = jnp.maximum(ss * inv_cnt - mean * mean, 0.0)         # biased, clamped
    scale = gamma_ref[...] * jax.lax.rsqrt(var + _EPS)
    shift = beta_ref[...] - mean * scale
    o_ref[...] = (x * scale + shift).astype(o_ref.dtype)


def _bn_stats_kernel(x_ref, gamma_ref, beta_ref, scale_ref, shift_ref,
                     sum_ref, ssq_ref, *, inv_count):
    """Phase 1: accumulate per-channel sum / sum-of-squares over N tiles.

    Grid = (channel tiles [parallel], N tiles [arbitrary, reduction, last]).
    Outputs per-channel scale/shift, written at the last reduction step.
    """
    n_idx = pl.program_id(1)

    @pl.when(n_idx == 0)
    def _init():
        sum_ref[...] = jnp.zeros_like(sum_ref)
        ssq_ref[...] = jnp.zeros_like(ssq_ref)

    x = x_ref[...].astype(jnp.float32)                         # (n_tile, c_tile, HW)
    sum_ref[...] += jnp.sum(jnp.sum(x, axis=2, keepdims=True), axis=0, keepdims=True)
    ssq_ref[...] += jnp.sum(jnp.sum(x * x, axis=2, keepdims=True), axis=0, keepdims=True)

    @pl.when(n_idx == pl.num_programs(1) - 1)
    def _finalize():
        mean = sum_ref[...] * inv_count                        # (1, c_tile, 1), f32
        var = jnp.maximum(ssq_ref[...] * inv_count - mean * mean, 0.0)
        scale = gamma_ref[...] * jax.lax.rsqrt(var + _EPS)
        scale_ref[...] = scale
        shift_ref[...] = beta_ref[...] - mean * scale


def _bn_apply_kernel(x_ref, scale_ref, shift_ref, o_ref):
    """Phase 2: y = x * scale + shift (per channel, scale/shift kept in f32)."""
    scale = scale_ref[...]                                     # (1, c_tile, 1), f32
    shift = shift_ref[...]
    o_ref[...] = (x_ref[...].astype(jnp.float32) * scale + shift).astype(o_ref.dtype)


# ----------------------------------------------------------------------------- wrapper

@functools.partial(jax.jit, static_argnames=("force_two_phase", "max_block_bytes"))
def _batchnorm2d_pallas(x_nchw, gamma, beta, force_two_phase=False, max_block_bytes=None):
    budget = _tpu_budget()
    vmem_limit = budget["vmem_limit"]
    block_bytes = budget["block_bytes"] if max_block_bytes is None else max_block_bytes
    min_blocks = 2 if budget["num_cores"] >= 2 else 1

    N, C, H, W = x_nchw.shape
    HW = H * W
    itemsize = jnp.dtype(x_nchw.dtype).itemsize
    sub = _sublane_multiple(x_nchw.dtype)

    # Free reshape (contiguous dims merge) — no transpose, H*W stays on lanes.
    x3 = x_nchw.reshape(N, C, HW)
    g3 = gamma.reshape(1, C, 1).astype(jnp.float32)
    b3 = beta.reshape(1, C, 1).astype(jnp.float32)

    # ---------------- Path A: fused single pass, grid over channel tiles ----------------
    # Per-channel, per-step VMEM cost: double-buffered in+out blocks (input dtype)
    # plus ~2x f32 in-kernel intermediates (upcast + square / product temp).
    per_ch_fused = N * HW * (4 * itemsize + 2 * 4)
    fused_budget = (3 * vmem_limit) // 4
    if not force_two_phase:
        ct_a = _pick_channel_tile(C, per_ch_fused, fused_budget, sub, min_blocks)
        if ct_a * per_ch_fused <= fused_budget:
            out3 = pl.pallas_call(
                _bn_fused_kernel,
                out_shape=jax.ShapeDtypeStruct((N, C, HW), x_nchw.dtype),
                grid=(C // ct_a,),
                in_specs=[
                    pl.BlockSpec((N, ct_a, HW), lambda c: (0, c, 0)),
                    pl.BlockSpec((1, ct_a, 1), lambda c: (0, c, 0)),
                    pl.BlockSpec((1, ct_a, 1), lambda c: (0, c, 0)),
                ],
                out_specs=pl.BlockSpec((N, ct_a, HW), lambda c: (0, c, 0)),
                compiler_params=pltpu.CompilerParams(
                    dimension_semantics=("parallel",),
                    vmem_limit_bytes=vmem_limit),
            )(x3, g3, b3)
            return out3.reshape(N, C, H, W)

    # ---------------- Path B: two-phase (stats, then normalize), tiled over N ------------
    ct = _pick_channel_tile(C, HW * itemsize, block_bytes, sub, min_blocks)
    nt = 1
    for d in range(N, 0, -1):
        if N % d == 0 and d * ct * HW * itemsize <= block_bytes:
            nt = d
            break
    grid = (C // ct, N // nt)   # channel axis parallel, N (reduction) axis last

    x_spec = pl.BlockSpec((nt, ct, HW), lambda c, n: (n, c, 0))
    cvec_spec = pl.BlockSpec((1, ct, 1), lambda c, n: (0, c, 0))   # resident across n

    scale, shift = pl.pallas_call(
        functools.partial(_bn_stats_kernel, inv_count=1.0 / (N * HW)),
        out_shape=(jax.ShapeDtypeStruct((1, C, 1), jnp.float32),
                   jax.ShapeDtypeStruct((1, C, 1), jnp.float32)),
        grid=grid,
        in_specs=[x_spec, cvec_spec, cvec_spec],
        out_specs=(cvec_spec, cvec_spec),
        scratch_shapes=[pltpu.VMEM((1, ct, 1), jnp.float32),
                        pltpu.VMEM((1, ct, 1), jnp.float32)],
        compiler_params=pltpu.CompilerParams(
            dimension_semantics=("parallel", "arbitrary"),
            vmem_limit_bytes=vmem_limit),
    )(x3, g3, b3)

    out3 = pl.pallas_call(
        _bn_apply_kernel,
        out_shape=jax.ShapeDtypeStruct((N, C, HW), x_nchw.dtype),
        grid=grid,
        in_specs=[x_spec, cvec_spec, cvec_spec],
        out_specs=x_spec,
        compiler_params=pltpu.CompilerParams(
            dimension_semantics=("parallel", "parallel"),
            vmem_limit_bytes=vmem_limit),
    )(x3, scale, shift)

    return out3.reshape(N, C, H, W)


# ----------------------------------------------------------------------------- module API

def init_mixturenorm2d_params(num_features, key):
    # PyTorch default init is gamma=1, beta=0; perturb deterministically so the
    # two norms are distinguishable.
    k1, k2, k3, k4 = jax.random.split(key, 4)
    return {
        "gamma1": 1.0 + 0.1 * jax.random.normal(k1, (num_features,), jnp.float32),
        "beta1": 0.1 * jax.random.normal(k2, (num_features,), jnp.float32),
        "gamma2": 1.0 + 0.1 * jax.random.normal(k3, (num_features,), jnp.float32),
        "beta2": 0.1 * jax.random.normal(k4, (num_features,), jnp.float32),
    }


def mixturenorm2d(x, params, adv=False):
    """Forward of Mixturenorm2d: norm2(x) if adv else norm1(x)."""
    if adv:
        gamma, beta = params["gamma2"], params["beta2"]
    else:
        gamma, beta = params["gamma1"], params["beta1"]
    return _batchnorm2d_pallas(x, gamma, beta)


def _batchnorm2d_ref(x, gamma, beta):
    # Pure-JAX reference (training-mode BatchNorm2d).
    mean = jnp.mean(x, axis=(0, 2, 3), keepdims=True)
    var = jnp.mean((x - mean) ** 2, axis=(0, 2, 3), keepdims=True)
    g = gamma.reshape(1, -1, 1, 1)
    b = beta.reshape(1, -1, 1, 1)
    return (x - mean) * jax.lax.rsqrt(var + _EPS) * g + b


if __name__ == "__main__":
    key = jax.random.PRNGKey(0)
    kx, kp = jax.random.split(key)

    N, C, H, W = 2, 4, 16, 16
    x = jax.random.normal(kx, (N, C, H, W), jnp.float32)
    params = init_mixturenorm2d_params(C, kp)

    # adv=False path (norm1) — small shape takes the fused single-pass path.
    out = jax.block_until_ready(mixturenorm2d(x, params, adv=False))
    ref = _batchnorm2d_ref(x, params["gamma1"], params["beta1"])
    assert out.shape == x.shape
    assert jnp.allclose(out, ref, atol=1e-4, rtol=1e-4)

    # adv=True path (norm2).
    out_adv = jax.block_until_ready(mixturenorm2d(x, params, adv=True))
    ref_adv = _batchnorm2d_ref(x, params["gamma2"], params["beta2"])
    assert jnp.allclose(out_adv, ref_adv, atol=1e-4, rtol=1e-4)

    # Also exercise the tiled two-phase path with tiny blocks so the cross-tile
    # accumulator (pl.when init/finalize + VMEM scratch) logic is covered.
    out_2p = jax.block_until_ready(
        _batchnorm2d_pallas(x, params["gamma1"], params["beta1"],
                            force_two_phase=True, max_block_bytes=4096))
    assert jnp.allclose(out_2p, ref, atol=1e-4, rtol=1e-4)

    print("KERNEL_OK")
</pallas_src>

<mosaic_0001>
module attributes {stable_mosaic.version = 11 : i64} {
  func.func @_bn_fused_kernel(%arg0: i32, %arg1: memref<2x4x256xf32, #tpu.memory_space<vmem>>, %arg2: memref<1x4x1xf32, #tpu.memory_space<vmem>>, %arg3: memref<1x4x1xf32, #tpu.memory_space<vmem>>, %arg4: memref<2x4x256xf32, #tpu.memory_space<vmem>>) attributes {dimension_semantics = [#tpu.dimension_semantics<parallel>], iteration_bounds = array<i64: 1>, scalar_prefetch = 0 : i64, scratch_operands = 0 : i64, tpu.core_type = #tpu.core_type<tc>, window_params = [{transform_indices = @transform_0, window_bounds = array<i64: 2, 4, 256>}, {transform_indices = @transform_1, window_bounds = array<i64: 1, 4, 1>}, {transform_indices = @transform_2, window_bounds = array<i64: 1, 4, 1>}, {transform_indices = @transform_3, window_bounds = array<i64: 2, 4, 256>}]} {
    %c0 = arith.constant 0 : index
    %c0_0 = arith.constant 0 : index
    %c0_1 = arith.constant 0 : index
    %0 = vector.load %arg1[%c0, %c0_0, %c0_1] : memref<2x4x256xf32, #tpu.memory_space<vmem>>, vector<2x4x256xf32>
    %cst = arith.constant dense<0.000000e+00> : vector<2x4xf32>
    %1 = vector.multi_reduction <add>, %0, %cst [2] : vector<2x4x256xf32> to vector<2x4xf32>
    %2 = vector.shape_cast %1 : vector<2x4xf32> to vector<2x4x1xf32>
    %cst_2 = arith.constant dense<0.000000e+00> : vector<4x1xf32>
    %3 = vector.multi_reduction <add>, %2, %cst_2 [0] : vector<2x4x1xf32> to vector<4x1xf32>
    %4 = vector.shape_cast %3 : vector<4x1xf32> to vector<1x4x1xf32>
    %5 = arith.mulf %0, %0 : vector<2x4x256xf32>
    %cst_3 = arith.constant dense<0.000000e+00> : vector<2x4xf32>
    %6 = vector.multi_reduction <add>, %5, %cst_3 [2] : vector<2x4x256xf32> to vector<2x4xf32>
    %7 = vector.shape_cast %6 : vector<2x4xf32> to vector<2x4x1xf32>
    %cst_4 = arith.constant dense<0.000000e+00> : vector<4x1xf32>
    %8 = vector.multi_reduction <add>, %7, %cst_4 [0] : vector<2x4x1xf32> to vector<4x1xf32>
    %9 = vector.shape_cast %8 : vector<4x1xf32> to vector<1x4x1xf32>
    %cst_5 = arith.constant 0.001953125 : f32
    %10 = vector.broadcast %cst_5 : f32 to vector<1x4x1xf32>
    %11 = arith.mulf %4, %10 : vector<1x4x1xf32>
    %cst_6 = arith.constant 0.001953125 : f32
    %12 = vector.broadcast %cst_6 : f32 to vector<1x4x1xf32>
    %13 = arith.mulf %9, %12 : vector<1x4x1xf32>
    %14 = arith.mulf %11, %11 : vector<1x4x1xf32>
    %15 = arith.subf %13, %14 : vector<1x4x1xf32>
    %cst_7 = arith.constant 0.000000e+00 : f32
    %16 = vector.broadcast %cst_7 : f32 to vector<1x4x1xf32>
    %17 = arith.maximumf %15, %16 : vector<1x4x1xf32>
    %c0_8 = arith.constant 0 : index
    %c0_9 = arith.constant 0 : index
    %c0_10 = arith.constant 0 : index
    %18 = vector.load %arg2[%c0_8, %c0_9, %c0_10] : memref<1x4x1xf32, #tpu.memory_space<vmem>>, vector<1x4x1xf32>
    %cst_11 = arith.constant 9.99999974E-6 : f32
    %19 = vector.broadcast %cst_11 : f32 to vector<1x4x1xf32>
    %20 = arith.addf %17, %19 : vector<1x4x1xf32>
    %21 = math.rsqrt %20 : vector<1x4x1xf32>
    %22 = arith.mulf %18, %21 : vector<1x4x1xf32>
    %c0_12 = arith.constant 0 : index
    %c0_13 = arith.constant 0 : index
    %c0_14 = arith.constant 0 : index
    %23 = vector.load %arg3[%c0_12, %c0_13, %c0_14] : memref<1x4x1xf32, #tpu.memory_space<vmem>>, vector<1x4x1xf32>
    %24 = arith.mulf %11, %22 : vector<1x4x1xf32>
    %25 = arith.subf %23, %24 : vector<1x4x1xf32>
    %26 = vector.broadcast %22 : vector<1x4x1xf32> to vector<2x4x256xf32>
    %27 = arith.mulf %0, %26 : vector<2x4x256xf32>
    %28 = vector.broadcast %25 : vector<1x4x1xf32> to vector<2x4x256xf32>
    %29 = arith.addf %27, %28 : vector<2x4x256xf32>
    %c0_15 = arith.constant 0 : index
    %c0_16 = arith.constant 0 : index
    %c0_17 = arith.constant 0 : index
    %30 = vector.load %arg4[%c0_15, %c0_16, %c0_17] : memref<2x4x256xf32, #tpu.memory_space<vmem>>, vector<2x4x256xf32>
    tpu.vector_store %arg4[%c0_15, %c0_16, %c0_17], %29 {strides = array<i32>} : memref<2x4x256xf32, #tpu.memory_space<vmem>>, vector<2x4x256xf32>,
    return
  }
  func.func @transform_0(%arg0: i32) -> (i32, i32, i32) {
    %c0_i32 = arith.constant 0 : i32
    %c0_i32_0 = arith.constant 0 : i32
    %c0_i32_1 = arith.constant 0 : i32
    return %c0_i32, %arg0, %c0_i32_0 : i32, i32, i32
  }
  func.func @transform_1(%arg0: i32) -> (i32, i32, i32) {
    %c0_i32 = arith.constant 0 : i32
    %c0_i32_0 = arith.constant 0 : i32
    %c0_i32_1 = arith.constant 0 : i32
    return %c0_i32, %arg0, %c0_i32_0 : i32, i32, i32
  }
  func.func @transform_2(%arg0: i32) -> (i32, i32, i32) {
    %c0_i32 = arith.constant 0 : i32
    %c0_i32_0 = arith.constant 0 : i32
    %c0_i32_1 = arith.constant 0 : i32
    return %c0_i32, %arg0, %c0_i32_0 : i32, i32, i32
  }
  func.func @transform_3(%arg0: i32) -> (i32, i32, i32) {
    %c0_i32 = arith.constant 0 : i32
    %c0_i32_0 = arith.constant 0 : i32
    %c0_i32_1 = arith.constant 0 : i32
    return %c0_i32, %arg0, %c0_i32_0 : i32, i32, i32
  }
}

</mosaic_0001>

<llo_original>
// kernel: _batchnorm2d_pallas.1
$region0: #{_batchnorm2d_pallas.1}
  #allocation0 [shape = 'u32[]', space=smem, size = 0x4, offset = 0x4, fixed_abs, tag = 'smem constant byte address 0x4 - core index']
  #allocation1 [shape = 'u32[144,128]{1,0:T(1,128)}', space=vmem, size = 0x12000, scoped, tag = 'internal scratch']
  %s0 = inlined_call_operand.hbm [shape: f32[2,4,256], index: 0, kind: input, shape index: {}]
  %s1 = inlined_call_operand.hbm [shape: f32[1,4,1], index: 1, kind: input, shape index: {}]
  %s2 = inlined_call_operand.hbm [shape: f32[1,4,1], index: 2, kind: input, shape index: {}]
  %s3 = inlined_call_operand.hbm [shape: f32[2,4,256], index: 3, kind: output, shape index: {}]
  %s4 = sld [smem:[#allocation0]]
  $region34: #{_batchnorm2d_pallas.1} parent=0
    _
  %s6 = ssub.s32 1, %s4
  %s7 = scalar_select 0, %s6, %s4
  $region1: #{_batchnorm2d_pallas.1} parent=0
    #allocation2 [shape = 'u8[8192]{0}', space=vmem, size = 0x2000, scoped, tag = 'input window, operand 0, single buffered']
    #allocation3 [shape = 's32[1]{0}', space=sflag, size = 0x4, scoped, tag = 'scoped memory for _batchnorm2d_pallas.1']
    #allocation4 [shape = 's32[1]{0}', space=sflag, size = 0x4, scoped, tag = 'scoped memory for _batchnorm2d_pallas.1']
    #allocation5 [shape = 'u8[2048]{0}', space=vmem, size = 0x800, scoped, tag = 'input window, operand 1, single buffered']
    #allocation6 [shape = 's32[1]{0}', space=sflag, size = 0x4, scoped, tag = 'scoped memory for _batchnorm2d_pallas.1']
    #allocation7 [shape = 'u8[2048]{0}', space=vmem, size = 0x800, scoped, tag = 'input window, operand 2, single buffered']
    #allocation8 [shape = 'u8[8192]{0}', space=vmem, size = 0x2000, scoped, tag = 'output window, operand 0, single buffered']
    %8 = vsyncpa [#allocation3], 0
    %9 = vsyncpa [#allocation6], 0
    %10 = vsyncpa [#allocation4], 0
    // Predicated region
    $region2: #{_batchnorm2d_pallas.1} parent=1 // pred_check
      _
    $region3: #{_batchnorm2d_pallas.1} parent=1 // pred_check_branch
      %12 = sbr.rel (0) target = $region5
    $region4: #{_batchnorm2d_pallas.1} parent=1 // pred_region
      %s14 = ssub.s32 256, 256
      %15 = vsyncadd [#allocation3], %s14
      %s16 = sshll.u32 [#allocation2], 4
      %s17 = int_to_ptr.vmem [resolvable:$true] %s16
      %22 = dma.hbm_to_vmem [thread:$0]  %s0, 256, %s17, [#allocation3], 128, 128, 8
    $region5: #{_batchnorm2d_pallas.1} parent=1 // pred_fallthru
      _
    // Predicated region
    $region6: #{_batchnorm2d_pallas.1} parent=1 // pred_check
      _
    $region7: #{_batchnorm2d_pallas.1} parent=1 // pred_check_branch
      %24 = sbr.rel (0) target = $region9
    $region8: #{_batchnorm2d_pallas.1} parent=1 // pred_region
      %s26 = ssub.s32 64, 64
      %27 = vsyncadd [#allocation6], %s26
      %s29 = sshll.u32 [#allocation5], 4
      %s30 = int_to_ptr.vmem [resolvable:$true] %s29
      %32 = dma.hbm_to_vmem [thread:$0]  %s1, 64, %s30, [#allocation6]
    $region9: #{_batchnorm2d_pallas.1} parent=1 // pred_fallthru
      _
    // Predicated region
    $region10: #{_batchnorm2d_pallas.1} parent=1 // pred_check
      _
    $region11: #{_batchnorm2d_pallas.1} parent=1 // pred_check_branch
      %34 = sbr.rel (0) target = $region13
    $region12: #{_batchnorm2d_pallas.1} parent=1 // pred_region
      %s36 = ssub.s32 64, 64
      %37 = vsyncadd [#allocation6], %s36
      %s39 = sshll.u32 [#allocation7], 4
      %s40 = int_to_ptr.vmem [resolvable:$true] %s39
      %42 = dma.hbm_to_vmem [thread:$0]  %s2, 64, %s40, [#allocation6]
    $region13: #{_batchnorm2d_pallas.1} parent=1 // pred_fallthru
      _
    // Predicated region
    $region14: #{_batchnorm2d_pallas.1} parent=1 // pred_check
      _
    $region15: #{_batchnorm2d_pallas.1} parent=1 // pred_check_branch
      %44 = sbr.rel (0) target = $region17
    $region16: #{_batchnorm2d_pallas.1} parent=1 // pred_region
      %45 = dma.done [#allocation3], 256
    $region17: #{_batchnorm2d_pallas.1} parent=1 // pred_fallthru
      _
    // Predicated region
    $region18: #{_batchnorm2d_pallas.1} parent=1 // pred_check
      _
    $region19: #{_batchnorm2d_pallas.1} parent=1 // pred_check_branch
      %47 = sbr.rel (0) target = $region21
    $region20: #{_batchnorm2d_pallas.1} parent=1 // pred_region
      %48 = dma.done [#allocation6], 64
    $region21: #{_batchnorm2d_pallas.1} parent=1 // pred_fallthru
      _
    // Predicated region
    $region22: #{_batchnorm2d_pallas.1} parent=1 // pred_check
      _
    $region23: #{_batchnorm2d_pallas.1} parent=1 // pred_check_branch
      %50 = sbr.rel (0) target = $region25
    $region24: #{_batchnorm2d_pallas.1} parent=1 // pred_region
      %51 = dma.done [#allocation6], 64
    $region25: #{_batchnorm2d_pallas.1} parent=1 // pred_fallthru
      _
    %v52 = vld [vmem:[#allocation2] sm:$0xff]
    %v53 = vld [vmem:[#allocation2 + $0x8] sm:$0xff]
    %v56 = vcombine.high %v52, %v52
    %v57 = vcombine.high %v53, %v53
    %vm60 = vcmask 1043456
    %v61 = vsel %vm60, %v52, 0.0
    %v62 = vsel %vm60, %v56, 0.0
    %v63 = vadd.f32 %v61, %v62
    %64 = vadd.xlane.f32.xlu0 %v63
    %v65 = vpop.xlane.xlu0 %64
    %v66 = vsel %vm60, %v53, 0.0
    %v67 = vsel %vm60, %v57, 0.0
    %v68 = vadd.f32 %v66, %v67
    %69 = vadd.xlane.f32.xlu0 %v68
    %v70 = vpop.xlane.xlu0 %69
    %v71 = vsel %vm60, %v65, 0.0
    %v72 = vsel %vm60, %v70, 0.0
    %v73 = vadd.f32 %v71, %v72
    %v74 = vmul.f32 %v52, %v52
    %v75 = vmul.f32 %v53, %v53
    %v78 = vcombine.high %v74, %v74
    %v79 = vcombine.high %v75, %v75
    %v82 = vsel %vm60, %v74, 0.0
    %v83 = vsel %vm60, %v78, 0.0
    %v84 = vadd.f32 %v82, %v83
    %85 = vadd.xlane.f32.xlu0 %v84
    %v86 = vpop.xlane.xlu0 %85
    %v87 = vsel %vm60, %v75, 0.0
    %v88 = vsel %vm60, %v79, 0.0
    %v89 = vadd.f32 %v87, %v88
    %90 = vadd.xlane.f32.xlu0 %v89
    %v91 = vpop.xlane.xlu0 %90
    %v92 = vsel %vm60, %v86, 0.0
    %v93 = vsel %vm60, %v91, 0.0
    %v94 = vadd.f32 %v92, %v93
    %v95 = vmul.f32 %v73, 0.001953125
    %v96 = vmul.f32 %v94, 0.001953125
    %v97 = vmul.f32 %v95, %v95
    %v98 = vsub.f32 %v96, %v97
    %v99 = vmax.f32 %v98, 0.0
    %v100 = vld [vmem:[#allocation5] sm:$0xf]
    %v101 = vadd.f32 %v99, 1e-05
    %v102 = vrsqrt.pop %v101
    %v103 = vmul.f32 %v100, %v102
    %v104 = vld [vmem:[#allocation7] sm:$0xf]
    %v105 = vmul.f32 %v95, %v103
    %v106 = vsub.f32 %v104, %v105
    %108 = vset.pattern.permute.xlu0 0
    %109 = vperm.xlu0 %108, %v103
    %v110 = vpop.permute.xlu0 %109
    %v112 = vunpack.c.l.s4 839922192
    %v113 = vunpack.c.0.s8 %v112
    %v114 = vlaneseq
    %v115 = vshrl.u32 %v114, 7
    %v116 = vsub.s32 %v113, %v115
    %v117 = vrot.slane %v110, %v116
    %v119 = vmul.f32 %v52, %v117
    %v120 = vmul.f32 %v53, %v117
    %122 = vset.pattern.permute.xlu0 0
    %123 = vperm.xlu0 %122, %v106
    %v124 = vpop.permute.xlu0 %123
    %v126 = vunpack.c.l.s4 839922192
    %v127 = vunpack.c.0.s8 %v126
    %v128 = vlaneseq
    %v129 = vshrl.u32 %v128, 7
    %v130 = vsub.s32 %v127, %v129
    %v131 = vrot.slane %v124, %v130
    %v133 = vadd.f32 %v119, %v131
    %v134 = vadd.f32 %v120, %v131
    %135 = vst [vmem:[#allocation8] sm:$0xff] %v133
    %136 = vst [vmem:[#allocation8 + $0x8] sm:$0xff] %v134
    // Predicated region
    $region26: #{_batchnorm2d_pallas.1} parent=1 // pred_check
      _
    $region27: #{_batchnorm2d_pallas.1} parent=1 // pred_check_branch
      %138 = sbr.rel (0) target = $region29
    $region28: #{_batchnorm2d_pallas.1} parent=1 // pred_region
      %s140 = ssub.s32 256, 256
      %141 = vsyncadd [#allocation4], %s140
      %s142 = sshll.u32 [#allocation8], 4
      %s143 = int_to_ptr.vmem [resolvable:$true] %s142
      %148 = dma.vmem_to_hbm [thread:$0]  %s143, 256, %s3, [#allocation4], 128, 128, 8
    $region29: #{_batchnorm2d_pallas.1} parent=1 // pred_fallthru
      _
    // Predicated region
    $region30: #{_batchnorm2d_pallas.1} parent=1 // pred_check
      _
    $region31: #{_batchnorm2d_pallas.1} parent=1 // pred_check_branch
      %150 = sbr.rel (0) target = $region33
    $region32: #{_batchnorm2d_pallas.1} parent=1 // pred_region
      %151 = dma.done [#allocation4], 256
    $region33: #{_batchnorm2d_pallas.1} parent=1 // pred_fallthru
      _
    %152 = vsyncpa [#allocation3], 1
    %153 = vsyncpa [#allocation6], 1
    %154 = vsyncpa [#allocation4], 1

</llo_original>
